<compile_context>
chip_gen: v5e
topology: v5e:2x2
jax: 0.10.0
libtpu: 0.0.40
codegen_flags: <defaults>
</compile_context>

<pallas_src>
import math

import jax
import jax.numpy as jnp
import numpy as np
from jax.experimental import pallas as pl
from jax.experimental.pallas import tpu as pltpu


def _ceil8(n):
    return ((n + 7) // 8) * 8


def _dot(a, b):
    return jnp.dot(a, b, preferred_element_type=jnp.float32)


def _leaky(v):
    return jnp.where(v > 0, v, 0.1 * v)


def make_kernel(pix_size, hidden_size, map_size, output_size):
    """Build the kernel closure (all offsets are static Python constants)."""
    H = hidden_size
    Hh = H // 2
    IN = 2 + pix_size
    M = map_size
    O = output_size

    # Sublane offsets of each weight block inside the packed weight slab.
    off_w1 = 0
    off_wj = off_w1 + _ceil8(IN)
    off_wr = off_wj + _ceil8(H)
    off_wm = off_wr + _ceil8(2 * H)
    off_wa = off_wm + _ceil8(H)
    off_wn = off_wa + _ceil8(M)
    n_rows = off_wn + _ceil8(M)

    packed_width = O + Hh + M + H + H + M
    assert packed_width <= 128, "packed output must fit one 128-lane slab"

    def kernel(x_ref, hid_ref, w_ref, b_ref, out_ref):
        x = x_ref[...]            # [B, IN]  (cat(xy, pix) raw input)
        hid = hid_ref[...]        # [B, H]
        B = x.shape[0]

        # ---- fused xy/pix embedding (block-diagonal weight) + LeakyReLU ----
        w1 = w_ref[off_w1:off_w1 + IN, 0:H]
        b1 = b_ref[0:1, 0:H]
        combined = _leaky(_dot(x, w1) + b1)       # [B, H] = [xy_emb | pix_emb]
        pix = combined[:, Hh:H]                   # LReLU(pix_embedding(pix))

        # ---- joint embedding + LeakyReLU ----
        wj = w_ref[off_wj:off_wj + H, 0:H]
        bj = b_ref[1:2, 0:H]
        x1 = _leaky(_dot(combined, wj) + bj)      # [B, H]

        # ---- RNN2 step: one fused [B,2H]x[2H,2H] dot -> (out | hidden') ----
        comb2 = jnp.concatenate([x1, hid], axis=1)          # [B, 2H] (64 lanes)
        wr = w_ref[off_wr:off_wr + 2 * H, 0:2 * H]
        br = b_ref[2:3, 0:2 * H]
        r = _dot(comb2, wr) + br                            # [B, 2H]
        x2 = r[:, 0:H]                                      # rnn output (act=None)
        hid_new = r[:, H:2 * H]                             # new hidden

        # dropout p=0 -> identity

        # ---- map readout + sigmoid ----
        wm = w_ref[off_wm:off_wm + H, 0:M]
        bm = b_ref[3:4, 0:M]
        map_ = _dot(x2, wm) + bm                            # [B, M]
        sig = jax.nn.sigmoid(map_)                          # map_to_pass_on

        # ---- after_map + LeakyReLU -> penult ----
        wa = w_ref[off_wa:off_wa + M, 0:M]
        ba = b_ref[4:5, 0:M]
        penult = _leaky(_dot(sig, wa) + ba)                 # [B, M]

        # ---- num readout ----
        wn = w_ref[off_wn:off_wn + M, 0:O]
        bn = b_ref[5:6, 0:O]
        num = _dot(penult, wn) + bn                         # [B, O]

        # ---- single lane-dense packed store (one full-width vst) ----
        pad = jnp.zeros((B, 128 - packed_width), jnp.float32)
        out_ref[...] = jnp.concatenate(
            [num, pix, map_, hid_new, x2, penult, pad], axis=1)

    return kernel, n_rows


# -------------------------- parameter handling ------------------------------


def init_linear(key, out_features, in_features):
    """Deterministic nn.Linear-style init: U(-1/sqrt(in), 1/sqrt(in))."""
    k = 1.0 / math.sqrt(in_features)
    kw, kb = jax.random.split(key)
    w = jax.random.uniform(kw, (out_features, in_features), jnp.float32, -k, k)
    b = jax.random.uniform(kb, (out_features,), jnp.float32, -k, k)
    return w, b


def make_params(key, pix_size, hidden_size, map_size, output_size):
    H, Hh, M, O = hidden_size, hidden_size // 2, map_size, output_size
    keys = jax.random.split(key, 8)
    p = {}
    p["xy_w"], p["xy_b"] = init_linear(keys[0], Hh, 2)
    p["pix_w"], p["pix_b"] = init_linear(keys[1], Hh, pix_size)
    p["joint_w"], p["joint_b"] = init_linear(keys[2], H, H)        # train_on='both'
    p["i2h_w"], p["i2h_b"] = init_linear(keys[3], H, 2 * H)        # RNN2 i2h
    p["i2o_w"], p["i2o_b"] = init_linear(keys[4], H, 2 * H)        # RNN2 i2o
    p["map_w"], p["map_b"] = init_linear(keys[5], M, H)
    p["after_w"], p["after_b"] = init_linear(keys[6], M, M)
    p["num_w"], p["num_b"] = init_linear(keys[7], O, M)            # par=False
    return p


def pack_params(p, pix_size, hidden_size, map_size, output_size):
    """Build the packed weight slab [n_rows, 128] and bias slab [8, 128] ONCE."""
    H, Hh, IN, M, O = hidden_size, hidden_size // 2, 2 + pix_size, map_size, output_size

    off_w1 = 0
    off_wj = off_w1 + _ceil8(IN)
    off_wr = off_wj + _ceil8(H)
    off_wm = off_wr + _ceil8(2 * H)
    off_wa = off_wm + _ceil8(H)
    off_wn = off_wa + _ceil8(M)
    n_rows = off_wn + _ceil8(M)

    # fused xy/pix embedding: block-diagonal [IN, H]
    w1 = jnp.zeros((IN, H), jnp.float32)
    w1 = w1.at[:2, :Hh].set(p["xy_w"].T)
    w1 = w1.at[2:, Hh:].set(p["pix_w"].T)
    wj = p["joint_w"].T                                             # [H, H]
    wr = jnp.concatenate([p["i2o_w"].T, p["i2h_w"].T], axis=1)      # [2H, 2H]
    wm = p["map_w"].T                                               # [H, M]
    wa = p["after_w"].T                                             # [M, M]
    wn = p["num_w"].T                                               # [M, O]

    W = jnp.zeros((n_rows, 128), jnp.float32)
    for off, w in ((off_w1, w1), (off_wj, wj), (off_wr, wr),
                   (off_wm, wm), (off_wa, wa), (off_wn, wn)):
        r, c = w.shape
        W = W.at[off:off + r, :c].set(w)

    bias_rows = (
        jnp.concatenate([p["xy_b"], p["pix_b"]]),           # row 0: fused embed bias
        p["joint_b"],                                        # row 1
        jnp.concatenate([p["i2o_b"], p["i2h_b"]]),           # row 2: fused rnn bias
        p["map_b"],                                          # row 3
        p["after_b"],                                        # row 4
        p["num_b"],                                          # row 5
    )
    B_slab = jnp.zeros((8, 128), jnp.float32)
    for i, b in enumerate(bias_rows):
        B_slab = B_slab.at[i, :b.shape[0]].set(b)
    return W, B_slab


# ------------------------------- forward ------------------------------------


def rnn_classifier_2stream_forward(x, hidden, w_slab, b_slab,
                                   pix_size, hidden_size, map_size, output_size):
    kernel, n_rows = make_kernel(pix_size, hidden_size, map_size, output_size)
    assert w_slab.shape == (n_rows, 128)
    B = x.shape[0]
    H, Hh, M, O = hidden_size, hidden_size // 2, map_size, output_size

    vmem = pl.BlockSpec(memory_space=pltpu.MemorySpace.VMEM)
    out = pl.pallas_call(
        kernel,
        out_shape=jax.ShapeDtypeStruct((B, 128), jnp.float32),
        in_specs=[vmem, vmem, vmem, vmem],
        out_specs=vmem,
    )(x.astype(jnp.float32), hidden.astype(jnp.float32), w_slab, b_slab)

    o = 0
    num = out[:, o:o + O]; o += O
    pix = out[:, o:o + Hh]; o += Hh
    map_ = out[:, o:o + M]; o += M
    hid_new = out[:, o:o + H]; o += H
    x2 = out[:, o:o + H]; o += H
    penult = out[:, o:o + M]
    return num, pix, map_, hid_new, x2, penult


def reference_forward(x, hidden, p):
    """Pure-JAX mirror of the PyTorch forward (train_on='both', par=False)."""
    def lin(v, w, b):
        return v @ w.T + b

    xy = x[:, :2]
    pix_in = x[:, 2:]
    xy_e = _leaky(lin(xy, p["xy_w"], p["xy_b"]))
    pix_e = _leaky(lin(pix_in, p["pix_w"], p["pix_b"]))
    combined = jnp.concatenate([xy_e, pix_e], axis=-1)
    x1 = _leaky(lin(combined, p["joint_w"], p["joint_b"]))
    comb2 = jnp.concatenate([x1, hidden], axis=1)
    x2 = lin(comb2, p["i2o_w"], p["i2o_b"])          # RNN2 output (act=None)
    hid_new = lin(comb2, p["i2h_w"], p["i2h_b"])     # new hidden
    map_ = lin(x2, p["map_w"], p["map_b"])
    sig = jax.nn.sigmoid(map_)
    penult = _leaky(lin(sig, p["after_w"], p["after_b"]))
    num = lin(penult, p["num_w"], p["num_b"])
    return num, pix_e, map_, hid_new, x2, penult


if __name__ == "__main__":
    B = 8                 # sublane multiple
    pix_size = 14         # input_size = 2 + pix_size = 16
    hidden_size = 32
    map_size = 9
    output_size = 8

    key = jax.random.PRNGKey(0)
    k_param, k_x, k_hid = jax.random.split(key, 3)

    params = make_params(k_param, pix_size, hidden_size, map_size, output_size)
    # Pack once, outside the per-call path.
    w_slab, b_slab = pack_params(params, pix_size, hidden_size, map_size, output_size)
    w_slab, b_slab = jax.block_until_ready((w_slab, b_slab))

    x = jax.random.normal(k_x, (B, 2 + pix_size), jnp.float32)
    hidden = jax.random.normal(k_hid, (B, hidden_size), jnp.float32)

    outs = rnn_classifier_2stream_forward(
        x, hidden, w_slab, b_slab, pix_size, hidden_size, map_size, output_size)
    outs = jax.block_until_ready(outs)

    refs = reference_forward(x, hidden, params)
    names = ("num", "pix", "map", "hidden", "x", "penult")
    for name, got, ref in zip(names, outs, refs):
        np.testing.assert_allclose(np.asarray(got), np.asarray(ref),
                                   rtol=1e-4, atol=1e-4, err_msg=name)

    print("KERNEL_OK")
</pallas_src>

<mosaic_0001>
module attributes {stable_mosaic.version = 11 : i64} {
  func.func @kernel(%arg0: memref<8x16xf32, #tpu.memory_space<vmem>>, %arg1: memref<8x32xf32, #tpu.memory_space<vmem>>, %arg2: memref<176x128xf32, #tpu.memory_space<vmem>>, %arg3: memref<8x128xf32, #tpu.memory_space<vmem>>, %arg4: memref<8x128xf32, #tpu.memory_space<vmem>>) attributes {dimension_semantics = [], scalar_prefetch = 0 : i64, scratch_operands = 0 : i64, tpu.core_type = #tpu.core_type<tc>} {
    %c0 = arith.constant 0 : index
    %c0_0 = arith.constant 0 : index
    %0 = vector.load %arg0[%c0, %c0_0] : memref<8x16xf32, #tpu.memory_space<vmem>>, vector<8x16xf32>
    %c0_1 = arith.constant 0 : index
    %c0_2 = arith.constant 0 : index
    %1 = vector.load %arg1[%c0_1, %c0_2] : memref<8x32xf32, #tpu.memory_space<vmem>>, vector<8x32xf32>
    %c0_3 = arith.constant 0 : index
    %c0_4 = arith.constant 0 : index
    %2 = vector.load %arg2[%c0_3, %c0_4] : memref<176x128xf32, #tpu.memory_space<vmem>>, vector<16x32xf32>
    %c0_5 = arith.constant 0 : index
    %c0_6 = arith.constant 0 : index
    %3 = vector.load %arg3[%c0_5, %c0_6] : memref<8x128xf32, #tpu.memory_space<vmem>>, vector<1x32xf32>
    %cst = arith.constant dense<0.000000e+00> : vector<8x32xf32>
    %4 = tpu.matmul %0, %2, %cst {dimension_numbers = #tpu.dot_dimension_numbers<[1], [0], [0], [1], [0, 0, 1, 1], [], []>} : vector<8x16xf32>, vector<16x32xf32>, vector<8x32xf32> -> vector<8x32xf32>
    %5 = vector.broadcast %3 : vector<1x32xf32> to vector<8x32xf32>
    %6 = arith.addf %4, %5 : vector<8x32xf32>
    %cst_7 = arith.constant 0.000000e+00 : f32
    %7 = vector.broadcast %cst_7 : f32 to vector<8x32xf32>
    %8 = arith.cmpf ogt, %6, %7 : vector<8x32xf32>
    %cst_8 = arith.constant 1.000000e-01 : f32
    %9 = vector.broadcast %cst_8 : f32 to vector<8x32xf32>
    %10 = arith.mulf %9, %6 : vector<8x32xf32>
    %11 = arith.select %8, %6, %10 : vector<8x32xi1>, vector<8x32xf32>
    %12 = vector.extract_strided_slice %11 {offsets = [0, 16], sizes = [8, 16], strides = [1, 1]} : vector<8x32xf32> to vector<8x16xf32>
    %c16 = arith.constant 16 : index
    %c0_9 = arith.constant 0 : index
    %13 = vector.load %arg2[%c16, %c0_9] : memref<176x128xf32, #tpu.memory_space<vmem>>, vector<32x32xf32>
    %c1 = arith.constant 1 : index
    %c0_10 = arith.constant 0 : index
    %14 = vector.load %arg3[%c1, %c0_10] : memref<8x128xf32, #tpu.memory_space<vmem>>, vector<1x32xf32>
    %cst_11 = arith.constant dense<0.000000e+00> : vector<8x32xf32>
    %15 = tpu.matmul %11, %13, %cst_11 {dimension_numbers = #tpu.dot_dimension_numbers<[1], [0], [0], [1], [0, 0, 1, 1], [], []>} : vector<8x32xf32>, vector<32x32xf32>, vector<8x32xf32> -> vector<8x32xf32>
    %16 = vector.broadcast %14 : vector<1x32xf32> to vector<8x32xf32>
    %17 = arith.addf %15, %16 : vector<8x32xf32>
    %cst_12 = arith.constant 0.000000e+00 : f32
    %18 = vector.broadcast %cst_12 : f32 to vector<8x32xf32>
    %19 = arith.cmpf ogt, %17, %18 : vector<8x32xf32>
    %cst_13 = arith.constant 1.000000e-01 : f32
    %20 = vector.broadcast %cst_13 : f32 to vector<8x32xf32>
    %21 = arith.mulf %20, %17 : vector<8x32xf32>
    %22 = arith.select %19, %17, %21 : vector<8x32xi1>, vector<8x32xf32>
    %23 = tpu.concatenate %22, %1 in 1 : vector<8x32xf32>, vector<8x32xf32> -> vector<8x64xf32>
    %c48 = arith.constant 48 : index
    %c0_14 = arith.constant 0 : index
    %24 = vector.load %arg2[%c48, %c0_14] : memref<176x128xf32, #tpu.memory_space<vmem>>, vector<64x64xf32>
    %c2 = arith.constant 2 : index
    %c0_15 = arith.constant 0 : index
    %25 = vector.load %arg3[%c2, %c0_15] : memref<8x128xf32, #tpu.memory_space<vmem>>, vector<1x64xf32>
    %cst_16 = arith.constant dense<0.000000e+00> : vector<8x64xf32>
    %26 = tpu.matmul %23, %24, %cst_16 {dimension_numbers = #tpu.dot_dimension_numbers<[1], [0], [0], [1], [0, 0, 1, 1], [], []>} : vector<8x64xf32>, vector<64x64xf32>, vector<8x64xf32> -> vector<8x64xf32>
    %27 = vector.broadcast %25 : vector<1x64xf32> to vector<8x64xf32>
    %28 = arith.addf %26, %27 : vector<8x64xf32>
    %29 = vector.extract_strided_slice %28 {offsets = [0, 0], sizes = [8, 32], strides = [1, 1]} : vector<8x64xf32> to vector<8x32xf32>
    %30 = vector.extract_strided_slice %28 {offsets = [0, 32], sizes = [8, 32], strides = [1, 1]} : vector<8x64xf32> to vector<8x32xf32>
    %c112 = arith.constant 112 : index
    %c0_17 = arith.constant 0 : index
    %31 = vector.load %arg2[%c112, %c0_17] : memref<176x128xf32, #tpu.memory_space<vmem>>, vector<32x9xf32>
    %c3 = arith.constant 3 : index
    %c0_18 = arith.constant 0 : index
    %32 = vector.load %arg3[%c3, %c0_18] : memref<8x128xf32, #tpu.memory_space<vmem>>, vector<1x9xf32>
    %cst_19 = arith.constant dense<0.000000e+00> : vector<8x9xf32>
    %33 = tpu.matmul %29, %31, %cst_19 {dimension_numbers = #tpu.dot_dimension_numbers<[1], [0], [0], [1], [0, 0, 1, 1], [], []>} : vector<8x32xf32>, vector<32x9xf32>, vector<8x9xf32> -> vector<8x9xf32>
    %34 = vector.broadcast %32 : vector<1x9xf32> to vector<8x9xf32>
    %35 = arith.addf %33, %34 : vector<8x9xf32>
    %36 = arith.negf %35 : vector<8x9xf32>
    %37 = math.exp %36 : vector<8x9xf32>
    %cst_20 = arith.constant 1.000000e+00 : f32
    %38 = vector.broadcast %cst_20 : f32 to vector<8x9xf32>
    %39 = arith.addf %38, %37 : vector<8x9xf32>
    %40 = arith.divf %38, %39 : vector<8x9xf32>
    %c144 = arith.constant 144 : index
    %c0_21 = arith.constant 0 : index
    %41 = vector.load %arg2[%c144, %c0_21] : memref<176x128xf32, #tpu.memory_space<vmem>>, vector<9x9xf32>
    %c4 = arith.constant 4 : index
    %c0_22 = arith.constant 0 : index
    %42 = vector.load %arg3[%c4, %c0_22] : memref<8x128xf32, #tpu.memory_space<vmem>>, vector<1x9xf32>
    %cst_23 = arith.constant dense<0.000000e+00> : vector<8x9xf32>
    %43 = tpu.matmul %40, %41, %cst_23 {dimension_numbers = #tpu.dot_dimension_numbers<[1], [0], [0], [1], [0, 0, 1, 1], [], []>} : vector<8x9xf32>, vector<9x9xf32>, vector<8x9xf32> -> vector<8x9xf32>
    %44 = vector.broadcast %42 : vector<1x9xf32> to vector<8x9xf32>
    %45 = arith.addf %43, %44 : vector<8x9xf32>
    %cst_24 = arith.constant 0.000000e+00 : f32
    %46 = vector.broadcast %cst_24 : f32 to vector<8x9xf32>
    %47 = arith.cmpf ogt, %45, %46 : vector<8x9xf32>
    %cst_25 = arith.constant 1.000000e-01 : f32
    %48 = vector.broadcast %cst_25 : f32 to vector<8x9xf32>
    %49 = arith.mulf %48, %45 : vector<8x9xf32>
    %50 = arith.select %47, %45, %49 : vector<8x9xi1>, vector<8x9xf32>
    %c160 = arith.constant 160 : index
    %c0_26 = arith.constant 0 : index
    %51 = vector.load %arg2[%c160, %c0_26] : memref<176x128xf32, #tpu.memory_space<vmem>>, vector<9x8xf32>
    %c5 = arith.constant 5 : index
    %c0_27 = arith.constant 0 : index
    %52 = vector.load %arg3[%c5, %c0_27] : memref<8x128xf32, #tpu.memory_space<vmem>>, vector<1x8xf32>
    %cst_28 = arith.constant dense<0.000000e+00> : vector<8x8xf32>
    %53 = tpu.matmul %50, %51, %cst_28 {dimension_numbers = #tpu.dot_dimension_numbers<[1], [0], [0], [1], [0, 0, 1, 1], [], []>} : vector<8x9xf32>, vector<9x8xf32>, vector<8x8xf32> -> vector<8x8xf32>
    %54 = vector.broadcast %52 : vector<1x8xf32> to vector<8x8xf32>
    %55 = arith.addf %53, %54 : vector<8x8xf32>
    %cst_29 = arith.constant 0.000000e+00 : f32
    %56 = vector.broadcast %cst_29 : f32 to vector<8x22xf32>
    %57 = tpu.concatenate %55, %12, %35, %30, %29, %50, %56 in 1 : vector<8x8xf32>, vector<8x16xf32>, vector<8x9xf32>, vector<8x32xf32>, vector<8x32xf32>, vector<8x9xf32>, vector<8x22xf32> -> vector<8x128xf32>
    %c0_30 = arith.constant 0 : index
    %c0_31 = arith.constant 0 : index
    %58 = vector.load %arg4[%c0_30, %c0_31] : memref<8x128xf32, #tpu.memory_space<vmem>>, vector<8x128xf32>
    tpu.vector_store %arg4[%c0_30, %c0_31], %57 {strides = array<i32>} : memref<8x128xf32, #tpu.memory_space<vmem>>, vector<8x128xf32>,
    return
  }
}

</mosaic_0001>

<llo_original>
// kernel: tpu_custom_call.1
$region0: #{tpu_custom_call.1}
  #allocation0 [shape = 'u32[]', space=smem, size = 0x4, offset = 0x4, fixed_abs, tag = 'smem constant byte address 0x4 - core index']
  #allocation1 [shape = 'u32[72,128]{1,0:T(1,128)}', space=vmem, size = 0x9000, scoped, tag = 'internal scratch']
  %s0 = inlined_call_operand.hbm [shape: f32[8,16], index: 0, kind: input, shape index: {}]
  %s1 = inlined_call_operand.hbm [shape: f32[8,32], index: 1, kind: input, shape index: {}]
  %s2 = inlined_call_operand.hbm [shape: f32[176,128], index: 2, kind: input, shape index: {}]
  %s3 = inlined_call_operand.hbm [shape: f32[8,128], index: 3, kind: input, shape index: {}]
  %s4 = inlined_call_operand.hbm [shape: f32[8,128], index: 4, kind: output, shape index: {}]
  %s5 = sld [smem:[#allocation0]]
  $region42: #{tpu_custom_call.1} parent=0
    _
  %s7 = ssub.s32 1, %s5
  %s8 = scalar_select 0, %s7, %s5
  $region1: #{tpu_custom_call.1} parent=0
    #allocation2 [shape = 'u8[4096]{0}', space=vmem, size = 0x1000, scoped, tag = 'input window, operand 0, single buffered']
    #allocation3 [shape = 's32[1]{0}', space=sflag, size = 0x4, scoped, tag = 'scoped memory for tpu_custom_call.1']
    #allocation4 [shape = 's32[1]{0}', space=sflag, size = 0x4, scoped, tag = 'scoped memory for tpu_custom_call.1']
    #allocation5 [shape = 'u8[4096]{0}', space=vmem, size = 0x1000, scoped, tag = 'input window, operand 1, single buffered']
    #allocation6 [shape = 's32[1]{0}', space=sflag, size = 0x4, scoped, tag = 'scoped memory for tpu_custom_call.1']
    #allocation7 [shape = 'u8[90112]{0}', space=vmem, size = 0x16000, scoped, tag = 'input window, operand 2, single buffered']
    #allocation8 [shape = 'u8[4096]{0}', space=vmem, size = 0x1000, scoped, tag = 'input window, operand 3, single buffered']
    #allocation9 [shape = 's32[1]{0}', space=sflag, size = 0x4, scoped, tag = 'scoped memory for tpu_custom_call.1']
    #allocation10 [shape = 'u8[4096]{0}', space=vmem, size = 0x1000, scoped, tag = 'output window, operand 0, single buffered']
    %9 = vsyncpa [#allocation3], 0
    %10 = vsyncpa [#allocation6], 0
    %11 = vsyncpa [#allocation9], 0
    %12 = vsyncpa [#allocation4], 0
    // Predicated region
    $region2: #{tpu_custom_call.1} parent=1 // pred_check
      _
    $region3: #{tpu_custom_call.1} parent=1 // pred_check_branch
      %14 = sbr.rel (0) target = $region5
    $region4: #{tpu_custom_call.1} parent=1 // pred_region
      %16 = vsyncadd [#allocation3], 0
      %s18 = sshll.u32 %s0, 4
      %s19 = int_to_ptr.hbm [resolvable:$true] %s18
      %s20 = sshll.u32 [#allocation2], 4
      %s21 = int_to_ptr.vmem [resolvable:$true] %s20
      %23 = dma.hbm_to_vmem [thread:$0]  %s19, 128, %s21, [#allocation3]
    $region5: #{tpu_custom_call.1} parent=1 // pred_fallthru
      _
    // Predicated region
    $region6: #{tpu_custom_call.1} parent=1 // pred_check
      _
    $region7: #{tpu_custom_call.1} parent=1 // pred_check_branch
      %25 = sbr.rel (0) target = $region9
    $region8: #{tpu_custom_call.1} parent=1 // pred_region
      %27 = vsyncadd [#allocation6], 0
      %s29 = sshll.u32 %s1, 4
      %s30 = int_to_ptr.hbm [resolvable:$true] %s29
      %s31 = sshll.u32 [#allocation5], 4
      %s32 = int_to_ptr.vmem [resolvable:$true] %s31
      %34 = dma.hbm_to_vmem [thread:$0]  %s30, 128, %s32, [#allocation6]
    $region9: #{tpu_custom_call.1} parent=1 // pred_fallthru
      _
    // Predicated region
    $region10: #{tpu_custom_call.1} parent=1 // pred_check
      _
    $region11: #{tpu_custom_call.1} parent=1 // pred_check_branch
      %36 = sbr.rel (0) target = $region13
    $region12: #{tpu_custom_call.1} parent=1 // pred_region
      %38 = vsyncadd [#allocation6], 0
      %s39 = sshll.u32 %s2, 4
      %s40 = int_to_ptr.hbm [resolvable:$true] %s39
      %s41 = sshll.u32 [#allocation7], 4
      %s42 = int_to_ptr.vmem [resolvable:$true] %s41
      %47 = dma.hbm_to_vmem [thread:$0]  %s40, 2816, %s42, [#allocation6], 128, 128, 8
    $region13: #{tpu_custom_call.1} parent=1 // pred_fallthru
      _
    // Predicated region
    $region14: #{tpu_custom_call.1} parent=1 // pred_check
      _
    $region15: #{tpu_custom_call.1} parent=1 // pred_check_branch
      %49 = sbr.rel (0) target = $region17
    $region16: #{tpu_custom_call.1} parent=1 // pred_region
      %51 = vsyncadd [#allocation9], 0
      %s53 = sshll.u32 %s3, 4
      %s54 = int_to_ptr.hbm [resolvable:$true] %s53
      %s55 = sshll.u32 [#allocation8], 4
      %s56 = int_to_ptr.vmem [resolvable:$true] %s55
      %58 = dma.hbm_to_vmem [thread:$0]  %s54, 128, %s56, [#allocation9]
    $region17: #{tpu_custom_call.1} parent=1 // pred_fallthru
      _
    // Predicated region
    $region18: #{tpu_custom_call.1} parent=1 // pred_check
      _
    $region19: #{tpu_custom_call.1} parent=1 // pred_check_branch
      %60 = sbr.rel (0) target = $region21
    $region20: #{tpu_custom_call.1} parent=1 // pred_region
      %62 = dma.done [#allocation3], 128
    $region21: #{tpu_custom_call.1} parent=1 // pred_fallthru
      _
    // Predicated region
    $region22: #{tpu_custom_call.1} parent=1 // pred_check
      _
    $region23: #{tpu_custom_call.1} parent=1 // pred_check_branch
      %64 = sbr.rel (0) target = $region25
    $region24: #{tpu_custom_call.1} parent=1 // pred_region
      %66 = dma.done [#allocation6], 128
    $region25: #{tpu_custom_call.1} parent=1 // pred_fallthru
      _
    // Predicated region
    $region26: #{tpu_custom_call.1} parent=1 // pred_check
      _
    $region27: #{tpu_custom_call.1} parent=1 // pred_check_branch
      %68 = sbr.rel (0) target = $region29
    $region28: #{tpu_custom_call.1} parent=1 // pred_region
      %70 = dma.done [#allocation6], 2816
    $region29: #{tpu_custom_call.1} parent=1 // pred_fallthru
      _
    // Predicated region
    $region30: #{tpu_custom_call.1} parent=1 // pred_check
      _
    $region31: #{tpu_custom_call.1} parent=1 // pred_check_branch
      %72 = sbr.rel (0) target = $region33
    $region32: #{tpu_custom_call.1} parent=1 // pred_region
      %74 = dma.done [#allocation9], 128
    $region33: #{tpu_custom_call.1} parent=1 // pred_fallthru
      _
    %v75 = vld [vmem:[#allocation2] sm:$0xff]
    %v76 = vld [vmem:[#allocation5] sm:$0xff]
    %v77 = vld [vmem:[#allocation7] sm:$0xff]
    %v78 = vld [vmem:[#allocation7 + $0x8] sm:$0xff]
    %v79 = vld [vmem:[#allocation8] sm:$0x1]
    %v80 = vperm.slane %v79, 0
    %vm81 = vcmask 130048
    %v83 = vsel %vm81, %v75, 0
    %85 = vmatpush.msra.mxu0 0.0
    %86 = vmatpush.msra.mxu0 0.0
    %87 = vmatpush.msra.mxu0 0.0
    %88 = vmatpush.msra.mxu0 0.0
    %89 = vmatpush.msra.mxu0 0.0
    %90 = vmatpush.msra.mxu0 0.0
    %91 = vmatpush.msra.mxu0 0.0
    %92 = vmatpush.msra.mxu0 0.0
    %93 = vmatpush.msra.mxu0 0.0
    %94 = vmatpush.msra.mxu0 0.0
    %95 = vmatpush.msra.mxu0 0.0
    %96 = vmatpush.msra.mxu0 0.0
    %97 = vmatpush.msra.mxu0 0.0
    %98 = vmatpush.msra.mxu0 0.0
    %99 = vmatpush.msra.mxu0 %v78
    %100 = vmatpush.msra.mxu0 %v77
    %101 = vmatmul.f32.gmra.mxu0 %v83
    %v102 = vpop.f32.mrf.mxu0
    %v103 = vadd.f32 %v80, %v102
    %104 = vdwg.mxu0
    %vm105 = vcmp.gt.f32.partialorder %v103, 0.0
    %v106 = vmul.f32 %v103, 0.1
    %v107 = vsel %vm105, %v103, %v106
    %v108 = vld [vmem:[#allocation7 + $0x10] sm:$0xff]
    %v109 = vld [vmem:[#allocation7 + $0x18] sm:$0xff]
    %v110 = vld [vmem:[#allocation7 + $0x20] sm:$0xff]
    %v111 = vld [vmem:[#allocation7 + $0x28] sm:$0xff]
    %v112 = vld [vmem:[#allocation8 + $0x1] sm:$0x1]
    %v113 = vperm.slane %v112, 0
    %vm114 = vcmask 261120
    %v116 = vsel %vm114, %v107, 0
    %118 = vmatpush.msra.mxu0 0.0
    %119 = vmatpush.msra.mxu0 0.0
    %120 = vmatpush.msra.mxu0 0.0
    %121 = vmatpush.msra.mxu0 0.0
    %122 = vmatpush.msra.mxu0 0.0
    %123 = vmatpush.msra.mxu0 0.0
    %124 = vmatpush.msra.mxu0 0.0
    %125 = vmatpush.msra.mxu0 0.0
    %126 = vmatpush.msra.mxu0 0.0
    %127 = vmatpush.msra.mxu0 0.0
    %128 = vmatpush.msra.mxu0 0.0
    %129 = vmatpush.msra.mxu0 0.0
    %130 = vmatpush.msra.mxu0 %v111
    %131 = vmatpush.msra.mxu0 %v110
    %132 = vmatpush.msra.mxu0 %v109
    %133 = vmatpush.msra.mxu0 %v108
    %134 = vmatmul.f32.gmra.mxu0 %v116
    %v135 = vpop.f32.mrf.mxu0
    %v136 = vadd.f32 %v113, %v135
    %137 = vdwg.mxu0
    %vm138 = vcmp.gt.f32.partialorder %v136, 0.0
    %v139 = vmul.f32 %v136, 0.1
    %v140 = vsel %vm138, %v136, %v139
    %142 = vrot.lane.b32.xlu0 %v76, 32
    %v143 = vpop.permute.xlu0 %142
    %v145 = vsel %vm114, %v140, %v143
    %v146 = vld [vmem:[#allocation7 + $0x30] sm:$0xff]
    %v147 = vld [vmem:[#allocation7 + $0x38] sm:$0xff]
    %v148 = vld [vmem:[#allocation7 + $0x40] sm:$0xff]
    %v149 = vld [vmem:[#allocation7 + $0x48] sm:$0xff]
    %v150 = vld [vmem:[#allocation7 + $0x50] sm:$0xff]
    %v151 = vld [vmem:[#allocation7 + $0x58] sm:$0xff]
    %v152 = vld [vmem:[#allocation7 + $0x60] sm:$0xff]
    %v153 = vld [vmem:[#allocation7 + $0x68] sm:$0xff]
    %v154 = vld [vmem:[#allocation8 + $0x2] sm:$0x1]
    %v155 = vperm.slane %v154, 0
    %vm156 = vcmask 523264
    %v158 = vsel %vm156, %v145, 0
    %160 = vmatpush.msra.mxu0 0.0
    %161 = vmatpush.msra.mxu0 0.0
    %162 = vmatpush.msra.mxu0 0.0
    %163 = vmatpush.msra.mxu0 0.0
    %164 = vmatpush.msra.mxu0 0.0
    %165 = vmatpush.msra.mxu0 0.0
    %166 = vmatpush.msra.mxu0 0.0
    %167 = vmatpush.msra.mxu0 0.0
    %168 = vmatpush.msra.mxu0 %v153
    %169 = vmatpush.msra.mxu0 %v152
    %170 = vmatpush.msra.mxu0 %v151
    %171 = vmatpush.msra.mxu0 %v150
    %172 = vmatpush.msra.mxu0 %v149
    %173 = vmatpush.msra.mxu0 %v148
    %174 = vmatpush.msra.mxu0 %v147
    %175 = vmatpush.msra.mxu0 %v146
    %176 = vmatmul.f32.gmra.mxu0 %v158
    %v177 = vpop.f32.mrf.mxu0
    %v178 = vadd.f32 %v155, %v177
    %179 = vdwg.mxu0
    %v180 = vld [vmem:[#allocation7 + $0x70] sm:$0xff]
    %v181 = vld [vmem:[#allocation7 + $0x78] sm:$0xff]
    %v182 = vld [vmem:[#allocation7 + $0x80] sm:$0xff]
    %v183 = vld [vmem:[#allocation7 + $0x88] sm:$0xff]
    %v184 = vld [vmem:[#allocation8 + $0x3] sm:$0x1]
    %v185 = vperm.slane %v184, 0
    %v187 = vsel %vm114, %v178, 0
    %189 = vmatpush.msra.mxu0 0.0
    %190 = vmatpush.msra.mxu0 0.0
    %191 = vmatpush.msra.mxu0 0.0
    %192 = vmatpush.msra.mxu0 0.0
    %193 = vmatpush.msra.mxu0 0.0
    %194 = vmatpush.msra.mxu0 0.0
    %195 = vmatpush.msra.mxu0 0.0
    %196 = vmatpush.msra.mxu0 0.0
    %197 = vmatpush.msra.mxu0 0.0
    %198 = vmatpush.msra.mxu0 0.0
    %199 = vmatpush.msra.mxu0 0.0
    %200 = vmatpush.msra.mxu0 0.0
    %201 = vmatpush.msra.mxu0 %v183
    %202 = vmatpush.msra.mxu0 %v182
    %203 = vmatpush.msra.mxu0 %v181
    %204 = vmatpush.msra.mxu0 %v180
    %205 = vmatmul.f32.gmra.mxu0 %v187
    %v206 = vpop.f32.mrf.mxu0
    %v207 = vadd.f32 %v185, %v206
    %208 = vdwg.mxu0
    %v209 = vxor.u32 %v207, 2147483648
    %v210 = vmul.f32 %v209, 1.442695
    %v211 = vpow.pop %v210
    %v212 = vadd.f32 %v211, 1.0
    %v213 = vrcp.pop %v212
    %v214 = vmul.f32 %v212, %v213
    %v215 = vsub.f32 1.0, %v214
    %v216 = vmul.f32 %v213, %v215
    %v217 = vadd.f32 %v213, %v216
    %vm218 = vweird.f32 %v212
    %vm219 = vweird.f32 %v213
    %vm220 = vmor %vm218, %vm219
    %v221 = vsel %vm220, %v213, %v217
    %v222 = vand.u32 2147483647, %v212
    %vm223 = vcmp.eq.f32.partialorder %v222, 8.507059e+37
    %v224 = vand.u32 %v212, 2147483648
    %v225 = vor.u32 1.1754944e-38, %v224
    %v226 = vsel %vm223, %v225, %v221
    %v227 = vmul.f32 1.0, %v226
    %v228 = vld [vmem:[#allocation7 + $0x90] sm:$0xff]
    %v229 = vld [vmem:[#allocation7 + $0x98] sm:$0x1]
    %v230 = vld [vmem:[#allocation8 + $0x4] sm:$0x1]
    %v231 = vperm.slane %v230, 0
    %vm232 = vcmask 72704
    %v234 = vsel %vm232, %v227, 0
    %vm236 = vcmask 1040384
    %v238 = vsel %vm236, %v229, 0
    %240 = vmatpush.msra.mxu0 0.0
    %241 = vmatpush.msra.mxu0 0.0
    %242 = vmatpush.msra.mxu0 0.0
    %243 = vmatpush.msra.mxu0 0.0
    %244 = vmatpush.msra.mxu0 0.0
    %245 = vmatpush.msra.mxu0 0.0
    %246 = vmatpush.msra.mxu0 0.0
    %247 = vmatpush.msra.mxu0 0.0
    %248 = vmatpush.msra.mxu0 0.0
    %249 = vmatpush.msra.mxu0 0.0
    %250 = vmatpush.msra.mxu0 0.0
    %251 = vmatpush.msra.mxu0 0.0
    %252 = vmatpush.msra.mxu0 0.0
    %253 = vmatpush.msra.mxu0 0.0
    %254 = vmatpush.msra.mxu0 %v238
    %255 = vmatpush.msra.mxu0 %v228
    %256 = vmatmul.f32.gmra.mxu0 %v234
    %v257 = vpop.f32.mrf.mxu0
    %v258 = vadd.f32 %v231, %v257
    %259 = vdwg.mxu0
    %vm260 = vcmp.gt.f32.partialorder %v258, 0.0
    %v261 = vmul.f32 %v258, 0.1
    %v262 = vsel %vm260, %v258, %v261
    %v263 = vld [vmem:[#allocation7 + $0xa0] sm:$0xff]
    %v264 = vld [vmem:[#allocation7 + $0xa8] sm:$0x1]
    %v265 = vld [vmem:[#allocation8 + $0x5] sm:$0x1]
    %v266 = vperm.slane %v265, 0
    %v268 = vsel %vm232, %v262, 0
    %v271 = vsel %vm236, %v264, 0
    %273 = vmatpush.msra.mxu0 0.0
    %274 = vmatpush.msra.mxu0 0.0
    %275 = vmatpush.msra.mxu0 0.0
    %276 = vmatpush.msra.mxu0 0.0
    %277 = vmatpush.msra.mxu0 0.0
    %278 = vmatpush.msra.mxu0 0.0
    %279 = vmatpush.msra.mxu0 0.0
    %280 = vmatpush.msra.mxu0 0.0
    %281 = vmatpush.msra.mxu0 0.0
    %282 = vmatpush.msra.mxu0 0.0
    %283 = vmatpush.msra.mxu0 0.0
    %284 = vmatpush.msra.mxu0 0.0
    %285 = vmatpush.msra.mxu0 0.0
    %286 = vmatpush.msra.mxu0 0.0
    %287 = vmatpush.msra.mxu0 %v271
    %288 = vmatpush.msra.mxu0 %v263
    %289 = vmatmul.f32.gmra.mxu0 %v268
    %v290 = vpop.f32.mrf.mxu0
    %v291 = vadd.f32 %v266, %v290
    %292 = vdwg.mxu0
    %293 = vrot.lane.b32.xlu0 %v107, 120
    %v294 = vpop.permute.xlu0 %293
    %297 = vrot.lane.b32.xlu0 %v207, 24
    %v298 = vpop.permute.xlu0 %297
    %300 = vrot.lane.b32.xlu0 %v178, 1
    %v301 = vpop.permute.xlu0 %300
    %303 = vrot.lane.b32.xlu0 %v178, 65
    %v304 = vpop.permute.xlu0 %303
    %306 = vrot.lane.b32.xlu0 %v262, 97
    %v307 = vpop.permute.xlu0 %306
    %vm309 = vcmask 64512
    %v310 = vsel %vm309, %v291, %v294
    %vm311 = vcmask 195584
    %v312 = vsel %vm311, %v310, %v298
    %vm313 = vcmask 269312
    %v314 = vsel %vm313, %v312, %v301
    %vm315 = vcmask 531456
    %v316 = vsel %vm315, %v314, %v304
    %vm317 = vcmask 793600
    %v318 = vsel %vm317, %v316, %v307
    %vm319 = vcmask 867328
    %v320 = vsel %vm319, %v318, 0.0
    %321 = vst [vmem:[#allocation10] sm:$0xff] %v320
    // Predicated region
    $region34: #{tpu_custom_call.1} parent=1 // pred_check
      _
    $region35: #{tpu_custom_call.1} parent=1 // pred_check_branch
      %323 = sbr.rel (0) target = $region37
    $region36: #{tpu_custom_call.1} parent=1 // pred_region
      %325 = vsyncadd [#allocation4], 0
      %s327 = sshll.u32 [#allocation10], 4
      %s328 = int_to_ptr.vmem [resolvable:$true] %s327
      %s329 = sshll.u32 %s4, 4
      %s330 = int_to_ptr.hbm [resolvable:$true] %s329
      %332 = dma.vmem_to_hbm [thread:$0]  %s328, 128, %s330, [#allocation4]
    $region37: #{tpu_custom_call.1} parent=1 // pred_fallthru
      _
    // Predicated region
    $region38: #{tpu_custom_call.1} parent=1 // pred_check
      _
    $region39: #{tpu_custom_call.1} parent=1 // pred_check_branch
      %334 = sbr.rel (0) target = $region41
    $region40: #{tpu_custom_call.1} parent=1 // pred_region
      %336 = dma.done [#allocation4], 128
    $region41: #{tpu_custom_call.1} parent=1 // pred_fallthru
      _
    %337 = vsyncpa [#allocation3], 1
    %338 = vsyncpa [#allocation6], 1
    %339 = vsyncpa [#allocation9], 1
    %340 = vsyncpa [#allocation4], 1

</llo_original>
